<compile_context>
chip_gen: v7x
topology: tpu7x:2x2x1
jax: 0.10.0
libtpu: 0.0.40
codegen_flags: <defaults>
</compile_context>

<pallas_src>
import jax
import jax.numpy as jnp
from jax.experimental import pallas as pl
from jax.experimental.pallas import tpu as pltpu

# ----------------------------- configuration -----------------------------
C_IN = 3            # in_c
C_OUT = 48          # embed_dim
BATCH = 2
H = 16
W = 16
HW = H * W          # 256 = 2 full 128-lane vregs
PAD_L = 128         # lane-aligned zero border inside the VMEM staging buffer
                    # (only W+1=17 zeros are ever read; 128 keeps stores aligned)
K_RAW = 9 * C_IN    # 27
K_PAD = 32          # im2col K padded up for a clean MXU shape


# ------------------------------ Pallas kernel ------------------------------
def _conv3x3_kernel(x_ref, w_ref, o_ref, xpad_ref, patch_ref):
    """Whole batch in one step: im2col in VMEM + one (48,32)x(32,B*HW) dot.

    x_ref:     (B, C_IN, HW)            raw flattened input (no host pad).
    w_ref:     (C_OUT, K_PAD)           weight, k = (ky*3+kx)*C_IN + cin.
    o_ref:     (B, C_OUT, HW)           output, lane-dense (HW = 2*128 lanes).
    xpad_ref:  (C_IN, PAD_L+HW+PAD_L)   staging buffer with zero borders.
    patch_ref: (K_PAD, B*HW)            im2col patch for the fused matmul.
    """
    nb = o_ref.shape[0]

    # One-time zero fills (single grid step): the flat-pad borders and the
    # padded K rows 27..31 (uninitialized VMEM may contain NaN; 0*NaN = NaN).
    xpad_ref[:, :PAD_L] = jnp.zeros((C_IN, PAD_L), jnp.float32)
    xpad_ref[:, PAD_L + HW:] = jnp.zeros((C_IN, PAD_L), jnp.float32)
    patch_ref[K_RAW:, :] = jnp.zeros((K_PAD - K_RAW, nb * HW), jnp.float32)

    # Column index of every output pixel in the flattened h*W + w layout.
    col = jax.lax.broadcasted_iota(jnp.int32, (1, HW), 1) % W
    left_ok = (col >= 1).astype(jnp.float32)      # kx offset -1 valid
    right_ok = (col <= W - 2).astype(jnp.float32)  # kx offset +1 valid

    for b in range(nb):
        # Lane-aligned store of this image into the zero-bordered buffer.
        xpad_ref[:, PAD_L:PAD_L + HW] = x_ref[b]
        xf = xpad_ref[...]                                   # (C_IN, 512)
        for ky in range(3):
            for kx in range(3):
                t = ky * 3 + kx
                off = PAD_L + (ky - 1) * W + (kx - 1)
                tap = xf[:, off:off + HW]                    # (C_IN, HW)
                # Row-wrap of the flat layout is killed by the column mask;
                # top/bottom boundary rows land in the zero border.
                if kx == 0:
                    tap = tap * left_ok
                elif kx == 2:
                    tap = tap * right_ok
                patch_ref[t * C_IN:(t + 1) * C_IN,
                          b * HW:(b + 1) * HW] = tap

    # Single fused MXU matmul over the whole batch: (48,32) x (32, B*256).
    res = jnp.dot(w_ref[...], patch_ref[...],
                  preferred_element_type=jnp.float32)        # (C_OUT, B*HW)
    for b in range(nb):
        o_ref[b] = res[:, b * HW:(b + 1) * HW]               # aligned slices


# ------------------------------ host wrappers --------------------------------
def prepare_weight(w_conv):
    """One-time weight prep: (C_OUT, C_IN, 3, 3) -> (C_OUT, K_PAD), k=(ky*3+kx)*C_IN+cin."""
    w = jnp.transpose(w_conv.astype(jnp.float32), (0, 2, 3, 1)).reshape(C_OUT, K_RAW)
    return jnp.pad(w, ((0, 0), (0, K_PAD - K_RAW)))


def overlap_patch_embed(x_nchw, w_mat):
    """x_nchw: (B, C_IN, H, W) f32; w_mat: (C_OUT, K_PAD) from prepare_weight."""
    b, cin, h, w = x_nchw.shape
    assert (cin, h, w) == (C_IN, H, W)

    # Free (contiguous) reshape only — no host-side padding, no extra dispatch.
    x_flat = x_nchw.astype(jnp.float32).reshape(b, C_IN, HW)

    out = pl.pallas_call(
        _conv3x3_kernel,
        grid=(1,),  # batch folded into a single step (best for single-TC v5e/v6e)
        in_specs=[
            pl.BlockSpec((b, C_IN, HW), lambda i: (0, 0, 0)),
            pl.BlockSpec((C_OUT, K_PAD), lambda i: (0, 0)),
        ],
        out_specs=pl.BlockSpec((b, C_OUT, HW), lambda i: (0, 0, 0)),
        out_shape=jax.ShapeDtypeStruct((b, C_OUT, HW), jnp.float32),
        scratch_shapes=[
            pltpu.VMEM((C_IN, PAD_L + HW + PAD_L), jnp.float32),  # staging
            pltpu.VMEM((K_PAD, b * HW), jnp.float32),             # im2col
        ],
        compiler_params=pltpu.CompilerParams(
            dimension_semantics=("arbitrary",)),
    )(x_flat, w_mat)

    return out.reshape(b, C_OUT, H, W)


# ----------------------------------- main -----------------------------------
if __name__ == "__main__":
    key = jax.random.PRNGKey(0)
    kx_key, kw_key = jax.random.split(key)
    x = jax.random.normal(kx_key, (BATCH, C_IN, H, W), jnp.float32)
    w_conv = 0.1 * jax.random.normal(kw_key, (C_OUT, C_IN, 3, 3), jnp.float32)

    # Weight prep happens once ("module init"), outside the forward path.
    w_mat = jax.block_until_ready(prepare_weight(w_conv))

    fwd = jax.jit(overlap_patch_embed)
    out = jax.block_until_ready(fwd(x, w_mat))

    assert out.shape == (BATCH, C_OUT, H, W), out.shape
    assert bool(jnp.all(jnp.isfinite(out)))

    # Reference: XLA conv matching nn.Conv2d(3, 48, 3, stride=1, pad=1, bias=False).
    ref = jax.lax.conv_general_dilated(
        x, w_conv, window_strides=(1, 1), padding="SAME",
        dimension_numbers=("NCHW", "OIHW", "NCHW"),
        precision=jax.lax.Precision.HIGHEST)
    max_err = float(jnp.max(jnp.abs(out - ref)))
    assert bool(jnp.allclose(out, ref, atol=1e-4, rtol=1e-4)), max_err

    print("KERNEL_OK")
</pallas_src>

<mosaic_0001>
module attributes {stable_mosaic.version = 11 : i64} {
  func.func @_conv3x3_kernel(%arg0: i32, %arg1: memref<2x3x256xf32, #tpu.memory_space<vmem>>, %arg2: memref<48x32xf32, #tpu.memory_space<vmem>>, %arg3: memref<2x48x256xf32, #tpu.memory_space<vmem>>, %arg4: memref<3x512xf32, #tpu.memory_space<vmem>>, %arg5: memref<32x512xf32, #tpu.memory_space<vmem>>) attributes {dimension_semantics = [#tpu.dimension_semantics<arbitrary>], iteration_bounds = array<i64: 1>, scalar_prefetch = 0 : i64, scratch_operands = 2 : i64, tpu.core_type = #tpu.core_type<tc>, window_params = [{pipeline_mode = #tpu.pipeline_mode<synchronous>, transform_indices = @transform_0, window_bounds = array<i64: 2, 3, 256>}, {pipeline_mode = #tpu.pipeline_mode<synchronous>, transform_indices = @transform_1, window_bounds = array<i64: 48, 32>}, {pipeline_mode = #tpu.pipeline_mode<synchronous>, transform_indices = @transform_2, window_bounds = array<i64: 2, 48, 256>}]} {
    %cst = arith.constant 0.000000e+00 : f32
    %0 = vector.broadcast %cst : f32 to vector<3x128xf32>
    %c0 = arith.constant 0 : index
    %c0_0 = arith.constant 0 : index
    %1 = vector.load %arg4[%c0, %c0_0] : memref<3x512xf32, #tpu.memory_space<vmem>>, vector<3x128xf32>
    tpu.vector_store %arg4[%c0, %c0_0], %0 {strides = array<i32>} : memref<3x512xf32, #tpu.memory_space<vmem>>, vector<3x128xf32>,
    %cst_1 = arith.constant 0.000000e+00 : f32
    %2 = vector.broadcast %cst_1 : f32 to vector<3x128xf32>
    %c0_2 = arith.constant 0 : index
    %c384 = arith.constant 384 : index
    %3 = vector.load %arg4[%c0_2, %c384] : memref<3x512xf32, #tpu.memory_space<vmem>>, vector<3x128xf32>
    tpu.vector_store %arg4[%c0_2, %c384], %2 {strides = array<i32>} : memref<3x512xf32, #tpu.memory_space<vmem>>, vector<3x128xf32>,
    %cst_3 = arith.constant 0.000000e+00 : f32
    %4 = vector.broadcast %cst_3 : f32 to vector<5x512xf32>
    %c27 = arith.constant 27 : index
    %c0_4 = arith.constant 0 : index
    %5 = vector.load %arg5[%c27, %c0_4] : memref<32x512xf32, #tpu.memory_space<vmem>>, vector<5x512xf32>
    tpu.vector_store %arg5[%c27, %c0_4], %4 {strides = array<i32>} : memref<32x512xf32, #tpu.memory_space<vmem>>, vector<5x512xf32>,
    %6 = tpu.iota {dimensions = array<i32: 1>} : vector<1x256xi32>
    %c16_i32 = arith.constant 16 : i32
    %c0_i32 = arith.constant 0 : i32
    %7 = arith.cmpi eq, %c16_i32, %c0_i32 : i32
    %c1_i32 = arith.constant 1 : i32
    %8 = arith.select %7, %c1_i32, %c16_i32 : i32
    %9 = vector.broadcast %8 : i32 to vector<1x256xi32>
    %10 = arith.remsi %6, %9 : vector<1x256xi32>
    %c0_i32_5 = arith.constant 0 : i32
    %11 = vector.broadcast %c0_i32_5 : i32 to vector<1x256xi32>
    %12 = arith.cmpi ne, %10, %11 : vector<1x256xi32>
    %c0_i32_6 = arith.constant 0 : i32
    %13 = vector.broadcast %c0_i32_6 : i32 to vector<1x256xi32>
    %14 = arith.cmpi slt, %10, %13 : vector<1x256xi32>
    %c0_i32_7 = arith.constant 0 : i32
    %15 = arith.cmpi slt, %8, %c0_i32_7 : i32
    %16 = vector.broadcast %15 : i1 to vector<1x256xi1>
    %17 = vector.broadcast %16 : vector<1x256xi1> to vector<1x256xi1>
    %18 = arith.xori %14, %17 : vector<1x256xi1>
    %19 = arith.andi %18, %12 : vector<1x256xi1>
    %20 = vector.broadcast %8 : i32 to vector<1x256xi32>
    %21 = arith.addi %10, %20 : vector<1x256xi32>
    %22 = arith.select %19, %21, %10 : vector<1x256xi1>, vector<1x256xi32>
    %c1_i32_8 = arith.constant 1 : i32
    %23 = vector.broadcast %c1_i32_8 : i32 to vector<1x256xi32>
    %24 = arith.cmpi sge, %22, %23 : vector<1x256xi32>
    %25 = arith.extui %24 : vector<1x256xi1> to vector<1x256xi32>
    %26 = arith.sitofp %25 : vector<1x256xi32> to vector<1x256xf32>
    %c14_i32 = arith.constant 14 : i32
    %27 = vector.broadcast %c14_i32 : i32 to vector<1x256xi32>
    %28 = arith.cmpi sle, %22, %27 : vector<1x256xi32>
    %29 = arith.extui %28 : vector<1x256xi1> to vector<1x256xi32>
    %30 = arith.sitofp %29 : vector<1x256xi32> to vector<1x256xf32>
    %c0_9 = arith.constant 0 : index
    %c0_10 = arith.constant 0 : index
    %c0_11 = arith.constant 0 : index
    %31 = vector.load %arg1[%c0_9, %c0_10, %c0_11] : memref<2x3x256xf32, #tpu.memory_space<vmem>>, vector<1x3x256xf32>
    %32 = vector.shape_cast %31 : vector<1x3x256xf32> to vector<3x256xf32>
    %c0_12 = arith.constant 0 : index
    %c128 = arith.constant 128 : index
    %33 = vector.load %arg4[%c0_12, %c128] : memref<3x512xf32, #tpu.memory_space<vmem>>, vector<3x256xf32>
    tpu.vector_store %arg4[%c0_12, %c128], %32 {strides = array<i32>} : memref<3x512xf32, #tpu.memory_space<vmem>>, vector<3x256xf32>,
    %c0_13 = arith.constant 0 : index
    %c0_14 = arith.constant 0 : index
    %34 = vector.load %arg4[%c0_13, %c0_14] : memref<3x512xf32, #tpu.memory_space<vmem>>, vector<3x512xf32>
    %35 = vector.extract_strided_slice %34 {offsets = [0, 111], sizes = [3, 256], strides = [1, 1]} : vector<3x512xf32> to vector<3x256xf32>
    %36 = vector.broadcast %26 : vector<1x256xf32> to vector<3x256xf32>
    %37 = arith.mulf %35, %36 : vector<3x256xf32>
    %c0_15 = arith.constant 0 : index
    %c0_16 = arith.constant 0 : index
    %38 = vector.load %arg5[%c0_15, %c0_16] : memref<32x512xf32, #tpu.memory_space<vmem>>, vector<3x256xf32>
    tpu.vector_store %arg5[%c0_15, %c0_16], %37 {strides = array<i32>} : memref<32x512xf32, #tpu.memory_space<vmem>>, vector<3x256xf32>,
    %39 = vector.extract_strided_slice %34 {offsets = [0, 112], sizes = [3, 256], strides = [1, 1]} : vector<3x512xf32> to vector<3x256xf32>
    %c3 = arith.constant 3 : index
    %c0_17 = arith.constant 0 : index
    %40 = vector.load %arg5[%c3, %c0_17] : memref<32x512xf32, #tpu.memory_space<vmem>>, vector<3x256xf32>
    tpu.vector_store %arg5[%c3, %c0_17], %39 {strides = array<i32>} : memref<32x512xf32, #tpu.memory_space<vmem>>, vector<3x256xf32>,
    %41 = vector.extract_strided_slice %34 {offsets = [0, 113], sizes = [3, 256], strides = [1, 1]} : vector<3x512xf32> to vector<3x256xf32>
    %42 = vector.broadcast %30 : vector<1x256xf32> to vector<3x256xf32>
    %43 = arith.mulf %41, %42 : vector<3x256xf32>
    %c6 = arith.constant 6 : index
    %c0_18 = arith.constant 0 : index
    %44 = vector.load %arg5[%c6, %c0_18] : memref<32x512xf32, #tpu.memory_space<vmem>>, vector<3x256xf32>
    tpu.vector_store %arg5[%c6, %c0_18], %43 {strides = array<i32>} : memref<32x512xf32, #tpu.memory_space<vmem>>, vector<3x256xf32>,
    %45 = vector.extract_strided_slice %34 {offsets = [0, 127], sizes = [3, 256], strides = [1, 1]} : vector<3x512xf32> to vector<3x256xf32>
    %46 = vector.broadcast %26 : vector<1x256xf32> to vector<3x256xf32>
    %47 = arith.mulf %45, %46 : vector<3x256xf32>
    %c9 = arith.constant 9 : index
    %c0_19 = arith.constant 0 : index
    %48 = vector.load %arg5[%c9, %c0_19] : memref<32x512xf32, #tpu.memory_space<vmem>>, vector<3x256xf32>
    tpu.vector_store %arg5[%c9, %c0_19], %47 {strides = array<i32>} : memref<32x512xf32, #tpu.memory_space<vmem>>, vector<3x256xf32>,
    %49 = vector.extract_strided_slice %34 {offsets = [0, 128], sizes = [3, 256], strides = [1, 1]} : vector<3x512xf32> to vector<3x256xf32>
    %c12 = arith.constant 12 : index
    %c0_20 = arith.constant 0 : index
    %50 = vector.load %arg5[%c12, %c0_20] : memref<32x512xf32, #tpu.memory_space<vmem>>, vector<3x256xf32>
    tpu.vector_store %arg5[%c12, %c0_20], %49 {strides = array<i32>} : memref<32x512xf32, #tpu.memory_space<vmem>>, vector<3x256xf32>,
    %51 = vector.extract_strided_slice %34 {offsets = [0, 129], sizes = [3, 256], strides = [1, 1]} : vector<3x512xf32> to vector<3x256xf32>
    %52 = vector.broadcast %30 : vector<1x256xf32> to vector<3x256xf32>
    %53 = arith.mulf %51, %52 : vector<3x256xf32>
    %c15 = arith.constant 15 : index
    %c0_21 = arith.constant 0 : index
    %54 = vector.load %arg5[%c15, %c0_21] : memref<32x512xf32, #tpu.memory_space<vmem>>, vector<3x256xf32>
    tpu.vector_store %arg5[%c15, %c0_21], %53 {strides = array<i32>} : memref<32x512xf32, #tpu.memory_space<vmem>>, vector<3x256xf32>,
    %55 = vector.extract_strided_slice %34 {offsets = [0, 143], sizes = [3, 256], strides = [1, 1]} : vector<3x512xf32> to vector<3x256xf32>
    %56 = vector.broadcast %26 : vector<1x256xf32> to vector<3x256xf32>
    %57 = arith.mulf %55, %56 : vector<3x256xf32>
    %c18 = arith.constant 18 : index
    %c0_22 = arith.constant 0 : index
    %58 = vector.load %arg5[%c18, %c0_22] : memref<32x512xf32, #tpu.memory_space<vmem>>, vector<3x256xf32>
    tpu.vector_store %arg5[%c18, %c0_22], %57 {strides = array<i32>} : memref<32x512xf32, #tpu.memory_space<vmem>>, vector<3x256xf32>,
    %59 = vector.extract_strided_slice %34 {offsets = [0, 144], sizes = [3, 256], strides = [1, 1]} : vector<3x512xf32> to vector<3x256xf32>
    %c21 = arith.constant 21 : index
    %c0_23 = arith.constant 0 : index
    %60 = vector.load %arg5[%c21, %c0_23] : memref<32x512xf32, #tpu.memory_space<vmem>>, vector<3x256xf32>
    tpu.vector_store %arg5[%c21, %c0_23], %59 {strides = array<i32>} : memref<32x512xf32, #tpu.memory_space<vmem>>, vector<3x256xf32>,
    %61 = vector.extract_strided_slice %34 {offsets = [0, 145], sizes = [3, 256], strides = [1, 1]} : vector<3x512xf32> to vector<3x256xf32>
    %62 = vector.broadcast %30 : vector<1x256xf32> to vector<3x256xf32>
    %63 = arith.mulf %61, %62 : vector<3x256xf32>
    %c24 = arith.constant 24 : index
    %c0_24 = arith.constant 0 : index
    %64 = vector.load %arg5[%c24, %c0_24] : memref<32x512xf32, #tpu.memory_space<vmem>>, vector<3x256xf32>
    tpu.vector_store %arg5[%c24, %c0_24], %63 {strides = array<i32>} : memref<32x512xf32, #tpu.memory_space<vmem>>, vector<3x256xf32>,
    %c1 = arith.constant 1 : index
    %c0_25 = arith.constant 0 : index
    %c0_26 = arith.constant 0 : index
    %65 = vector.load %arg1[%c1, %c0_25, %c0_26] : memref<2x3x256xf32, #tpu.memory_space<vmem>>, vector<1x3x256xf32>
    %66 = vector.shape_cast %65 : vector<1x3x256xf32> to vector<3x256xf32>
    %c0_27 = arith.constant 0 : index
    %c128_28 = arith.constant 128 : index
    %67 = vector.load %arg4[%c0_27, %c128_28] : memref<3x512xf32, #tpu.memory_space<vmem>>, vector<3x256xf32>
    tpu.vector_store %arg4[%c0_27, %c128_28], %66 {strides = array<i32>} : memref<3x512xf32, #tpu.memory_space<vmem>>, vector<3x256xf32>,
    %c0_29 = arith.constant 0 : index
    %c0_30 = arith.constant 0 : index
    %68 = vector.load %arg4[%c0_29, %c0_30] : memref<3x512xf32, #tpu.memory_space<vmem>>, vector<3x512xf32>
    %69 = vector.extract_strided_slice %68 {offsets = [0, 111], sizes = [3, 256], strides = [1, 1]} : vector<3x512xf32> to vector<3x256xf32>
    %70 = vector.broadcast %26 : vector<1x256xf32> to vector<3x256xf32>
    %71 = arith.mulf %69, %70 : vector<3x256xf32>
    %c0_31 = arith.constant 0 : index
    %c256 = arith.constant 256 : index
    %72 = vector.load %arg5[%c0_31, %c256] : memref<32x512xf32, #tpu.memory_space<vmem>>, vector<3x256xf32>
    tpu.vector_store %arg5[%c0_31, %c256], %71 {strides = array<i32>} : memref<32x512xf32, #tpu.memory_space<vmem>>, vector<3x256xf32>,
    %73 = vector.extract_strided_slice %68 {offsets = [0, 112], sizes = [3, 256], strides = [1, 1]} : vector<3x512xf32> to vector<3x256xf32>
    %c3_32 = arith.constant 3 : index
    %c256_33 = arith.constant 256 : index
    %74 = vector.load %arg5[%c3_32, %c256_33] : memref<32x512xf32, #tpu.memory_space<vmem>>, vector<3x256xf32>
    tpu.vector_store %arg5[%c3_32, %c256_33], %73 {strides = array<i32>} : memref<32x512xf32, #tpu.memory_space<vmem>>, vector<3x256xf32>,
    %75 = vector.extract_strided_slice %68 {offsets = [0, 113], sizes = [3, 256], strides = [1, 1]} : vector<3x512xf32> to vector<3x256xf32>
    %76 = vector.broadcast %30 : vector<1x256xf32> to vector<3x256xf32>
    %77 = arith.mulf %75, %76 : vector<3x256xf32>
    %c6_34 = arith.constant 6 : index
    %c256_35 = arith.constant 256 : index
    %78 = vector.load %arg5[%c6_34, %c256_35] : memref<32x512xf32, #tpu.memory_space<vmem>>, vector<3x256xf32>
    tpu.vector_store %arg5[%c6_34, %c256_35], %77 {strides = array<i32>} : memref<32x512xf32, #tpu.memory_space<vmem>>, vector<3x256xf32>,
    %79 = vector.extract_strided_slice %68 {offsets = [0, 127], sizes = [3, 256], strides = [1, 1]} : vector<3x512xf32> to vector<3x256xf32>
    %80 = vector.broadcast %26 : vector<1x256xf32> to vector<3x256xf32>
    %81 = arith.mulf %79, %80 : vector<3x256xf32>
    %c9_36 = arith.constant 9 : index
    %c256_37 = arith.constant 256 : index
    %82 = vector.load %arg5[%c9_36, %c256_37] : memref<32x512xf32, #tpu.memory_space<vmem>>, vector<3x256xf32>
    tpu.vector_store %arg5[%c9_36, %c256_37], %81 {strides = array<i32>} : memref<32x512xf32, #tpu.memory_space<vmem>>, vector<3x256xf32>,
    %83 = vector.extract_strided_slice %68 {offsets = [0, 128], sizes = [3, 256], strides = [1, 1]} : vector<3x512xf32> to vector<3x256xf32>
    %c12_38 = arith.constant 12 : index
    %c256_39 = arith.constant 256 : index
    %84 = vector.load %arg5[%c12_38, %c256_39] : memref<32x512xf32, #tpu.memory_space<vmem>>, vector<3x256xf32>
    tpu.vector_store %arg5[%c12_38, %c256_39], %83 {strides = array<i32>} : memref<32x512xf32, #tpu.memory_space<vmem>>, vector<3x256xf32>,
    %85 = vector.extract_strided_slice %68 {offsets = [0, 129], sizes = [3, 256], strides = [1, 1]} : vector<3x512xf32> to vector<3x256xf32>
    %86 = vector.broadcast %30 : vector<1x256xf32> to vector<3x256xf32>
    %87 = arith.mulf %85, %86 : vector<3x256xf32>
    %c15_40 = arith.constant 15 : index
    %c256_41 = arith.constant 256 : index
    %88 = vector.load %arg5[%c15_40, %c256_41] : memref<32x512xf32, #tpu.memory_space<vmem>>, vector<3x256xf32>
    tpu.vector_store %arg5[%c15_40, %c256_41], %87 {strides = array<i32>} : memref<32x512xf32, #tpu.memory_space<vmem>>, vector<3x256xf32>,
    %89 = vector.extract_strided_slice %68 {offsets = [0, 143], sizes = [3, 256], strides = [1, 1]} : vector<3x512xf32> to vector<3x256xf32>
    %90 = vector.broadcast %26 : vector<1x256xf32> to vector<3x256xf32>
    %91 = arith.mulf %89, %90 : vector<3x256xf32>
    %c18_42 = arith.constant 18 : index
    %c256_43 = arith.constant 256 : index
    %92 = vector.load %arg5[%c18_42, %c256_43] : memref<32x512xf32, #tpu.memory_space<vmem>>, vector<3x256xf32>
    tpu.vector_store %arg5[%c18_42, %c256_43], %91 {strides = array<i32>} : memref<32x512xf32, #tpu.memory_space<vmem>>, vector<3x256xf32>,
    %93 = vector.extract_strided_slice %68 {offsets = [0, 144], sizes = [3, 256], strides = [1, 1]} : vector<3x512xf32> to vector<3x256xf32>
    %c21_44 = arith.constant 21 : index
    %c256_45 = arith.constant 256 : index
    %94 = vector.load %arg5[%c21_44, %c256_45] : memref<32x512xf32, #tpu.memory_space<vmem>>, vector<3x256xf32>
    tpu.vector_store %arg5[%c21_44, %c256_45], %93 {strides = array<i32>} : memref<32x512xf32, #tpu.memory_space<vmem>>, vector<3x256xf32>,
    %95 = vector.extract_strided_slice %68 {offsets = [0, 145], sizes = [3, 256], strides = [1, 1]} : vector<3x512xf32> to vector<3x256xf32>
    %96 = vector.broadcast %30 : vector<1x256xf32> to vector<3x256xf32>
    %97 = arith.mulf %95, %96 : vector<3x256xf32>
    %c24_46 = arith.constant 24 : index
    %c256_47 = arith.constant 256 : index
    %98 = vector.load %arg5[%c24_46, %c256_47] : memref<32x512xf32, #tpu.memory_space<vmem>>, vector<3x256xf32>
    tpu.vector_store %arg5[%c24_46, %c256_47], %97 {strides = array<i32>} : memref<32x512xf32, #tpu.memory_space<vmem>>, vector<3x256xf32>,
    %c0_48 = arith.constant 0 : index
    %c0_49 = arith.constant 0 : index
    %99 = vector.load %arg2[%c0_48, %c0_49] : memref<48x32xf32, #tpu.memory_space<vmem>>, vector<48x32xf32>
    %c0_50 = arith.constant 0 : index
    %c0_51 = arith.constant 0 : index
    %100 = vector.load %arg5[%c0_50, %c0_51] : memref<32x512xf32, #tpu.memory_space<vmem>>, vector<32x512xf32>
    %cst_52 = arith.constant dense<0.000000e+00> : vector<48x512xf32>
    %101 = tpu.matmul %99, %100, %cst_52 {dimension_numbers = #tpu.dot_dimension_numbers<[1], [0], [0], [1], [0, 0, 1, 1], [], []>} : vector<48x32xf32>, vector<32x512xf32>, vector<48x512xf32> -> vector<48x512xf32>
    %102 = vector.extract_strided_slice %101 {offsets = [0, 0], sizes = [48, 256], strides = [1, 1]} : vector<48x512xf32> to vector<48x256xf32>
    %c0_53 = arith.constant 0 : index
    %c0_54 = arith.constant 0 : index
    %c0_55 = arith.constant 0 : index
    %103 = vector.load %arg3[%c0_53, %c0_54, %c0_55] : memref<2x48x256xf32, #tpu.memory_space<vmem>>, vector<1x48x256xf32>
    %104 = vector.shape_cast %103 : vector<1x48x256xf32> to vector<48x256xf32>
    %105 = vector.shape_cast %102 : vector<48x256xf32> to vector<1x48x256xf32>
    tpu.vector_store %arg3[%c0_53, %c0_54, %c0_55], %105 {strides = array<i32>} : memref<2x48x256xf32, #tpu.memory_space<vmem>>, vector<1x48x256xf32>,
    %106 = vector.extract_strided_slice %101 {offsets = [0, 256], sizes = [48, 256], strides = [1, 1]} : vector<48x512xf32> to vector<48x256xf32>
    %c1_56 = arith.constant 1 : index
    %c0_57 = arith.constant 0 : index
    %c0_58 = arith.constant 0 : index
    %107 = vector.load %arg3[%c1_56, %c0_57, %c0_58] : memref<2x48x256xf32, #tpu.memory_space<vmem>>, vector<1x48x256xf32>
    %108 = vector.shape_cast %107 : vector<1x48x256xf32> to vector<48x256xf32>
    %109 = vector.shape_cast %106 : vector<48x256xf32> to vector<1x48x256xf32>
    tpu.vector_store %arg3[%c1_56, %c0_57, %c0_58], %109 {strides = array<i32>} : memref<2x48x256xf32, #tpu.memory_space<vmem>>, vector<1x48x256xf32>,
    return
  }
  func.func @transform_0(%arg0: i32) -> (i32, i32, i32) {
    %c0_i32 = arith.constant 0 : i32
    %c0_i32_0 = arith.constant 0 : i32
    %c0_i32_1 = arith.constant 0 : i32
    %c0_i32_2 = arith.constant 0 : i32
    return %c0_i32, %c0_i32_0, %c0_i32_1 : i32, i32, i32
  }
  func.func @transform_1(%arg0: i32) -> (i32, i32) {
    %c0_i32 = arith.constant 0 : i32
    %c0_i32_0 = arith.constant 0 : i32
    %c0_i32_1 = arith.constant 0 : i32
    return %c0_i32, %c0_i32_0 : i32, i32
  }
  func.func @transform_2(%arg0: i32) -> (i32, i32, i32) {
    %c0_i32 = arith.constant 0 : i32
    %c0_i32_0 = arith.constant 0 : i32
    %c0_i32_1 = arith.constant 0 : i32
    %c0_i32_2 = arith.constant 0 : i32
    return %c0_i32, %c0_i32_0, %c0_i32_1 : i32, i32, i32
  }
}

</mosaic_0001>

<llo_original>
// kernel: overlap_patch_embed.1
$region0: #{overlap_patch_embed.1}
  #allocation0 [shape = 'u32[]', space=smem, size = 0x4, offset = 0x4, fixed_abs, tag = 'smem constant byte address 0x4 - core index']
  #allocation1 [shape = 'u32[144,128]{1,0:T(1,128)}', space=vmem, size = 0x12000, scoped, tag = 'internal scratch']
  #allocation2 [shape = 'f32[3,512]{1,0:T(4,128)}', space=vmem, size = 0x2000, scoped, tag = 'scratch operand']
  #allocation3 [shape = 'f32[32,512]{1,0:T(8,128)}', space=vmem, size = 0x10000, scoped, tag = 'scratch operand']
  %s0 = inlined_call_operand.vmem [shape: f32[2,3,256], index: 0, kind: input, shape index: {}]
  %s1 = inlined_call_operand.vmem [shape: f32[48,32], index: 1, kind: input, shape index: {}]
  %s2 = inlined_call_operand.vmem [shape: f32[2,48,256], index: 2, kind: output, shape index: {}]
  %s3 = sld [smem:[#allocation0]]
  $region18: #{overlap_patch_embed.1} parent=0
    _
  %s5 = ssub.s32 1, %s3
  %s6 = scalar_select 0, %s5, %s3
  // Predicated region
  $region2: #{overlap_patch_embed.1} parent=0 // pred_check
    _
  $region3: #{overlap_patch_embed.1} parent=0 // pred_check_branch
    %8 = sbr.rel (0) target = $region5
  $region4: #{overlap_patch_embed.1} parent=0 // pred_region
    _
  $region5: #{overlap_patch_embed.1} parent=0 // pred_fallthru
    _
  // Predicated region
  $region6: #{overlap_patch_embed.1} parent=0 // pred_check
    _
  $region7: #{overlap_patch_embed.1} parent=0 // pred_check_branch
    %10 = sbr.rel (0) target = $region9
  $region8: #{overlap_patch_embed.1} parent=0 // pred_region
    _
  $region9: #{overlap_patch_embed.1} parent=0 // pred_fallthru
    _
  %11 = vst [vmem:[#allocation2] sm:$0x7] 0.0
  %12 = vst [vmem:[#allocation2 + $0xc] sm:$0x7] 0.0
  %13 = vst [vmem:[#allocation3 + $0x60] sm:$0xf8] 0.0
  %14 = vst [vmem:[#allocation3 + $0x68] sm:$0xf8] 0.0
  %15 = vst [vmem:[#allocation3 + $0x70] sm:$0xf8] 0.0
  %16 = vst [vmem:[#allocation3 + $0x78] sm:$0xf8] 0.0
  %v17 = vlaneseq
  %v18 = vand.u32 %v17, 127
  %v19 = vadd.s32 %v18, 128
  %vm20 = vcmp.lt.s32.totalorder %v18, 0
  %v21 = vsub.s32 0, %v18
  %v22 = vsel %vm20, %v21, %v18
  %v23 = vshrl.u32 %v22, 4
  %v24 = vand.u32 %v22, 15
  %v25 = vsub.s32 0, %v24
  %v26 = vsel %vm20, %v25, %v24
  %vm27 = vcmp.lt.s32.totalorder %v19, 0
  %v28 = vsub.s32 0, %v19
  %v29 = vsel %vm27, %v28, %v19
  %v30 = vshrl.u32 %v29, 4
  %v31 = vand.u32 %v29, 15
  %v32 = vsub.s32 0, %v31
  %v33 = vsel %vm27, %v32, %v31
  %vm34 = vcmp.ne.s32.totalorder %v26, 0
  %vm35 = vcmp.ne.s32.totalorder %v33, 0
  %vm36 = vcmp.lt.s32.totalorder %v26, 0
  %vm37 = vcmp.lt.s32.totalorder %v33, 0
  %vm38 = vmand %vm36, %vm34
  %vm39 = vmand %vm37, %vm35
  %v40 = vadd.s32 %v26, 16
  %v41 = vadd.s32 %v33, 16
  %v42 = vsel %vm38, %v40, %v26
  %v43 = vsel %vm39, %v41, %v33
  %vm44 = vcmp.ge.s32.totalorder %v42, 1
  %vm45 = vcmp.ge.s32.totalorder %v43, 1
  %v46 = vsel %vm44, 1, 0
  %v47 = vsel %vm45, 1, 0
  %v48 = vcvt.s32.f32 %v46
  %v49 = vcvt.s32.f32 %v47
  %vm50 = vcmp.le.s32.totalorder %v42, 14
  %vm51 = vcmp.le.s32.totalorder %v43, 14
  %v52 = vsel %vm50, 1, 0
  %v53 = vsel %vm51, 1, 0
  %v54 = vcvt.s32.f32 %v52
  %v55 = vcvt.s32.f32 %v53
  %v56 = vld [vmem:[%s0] sm:$0x77]
  %57 = vst [vmem:[#allocation2 + $0x4] sm:$0x77] %v56
  %v58 = vld [vmem:[#allocation2] sm:$0x77]
  %v59 = vld [vmem:[#allocation2 + $0x8] sm:$0x77]
  %v62 = vcombine.low %v48, %v49
  %63 = vrot.lane.b32.xlu0 %v62, 111
  %v64 = vpop.permute.xlu0 %63
  %v65 = vrot.slane %v64, 4
  %vm66 = vcmask 908288
  %v67 = vsel %vm66, %v65, %v64
  %v70 = vmul.f32 %v58, %v67
  %v71 = vmul.f32 %v59, %v65
  %v74 = vcombine.high %v70, %v70
  %75 = vrot.lane.b32.xlu0 %v70, 17
  %v76 = vpop.permute.xlu0 %75
  %77 = vrot.lane.b32.xlu0 %v74, 17
  %v78 = vpop.permute.xlu0 %77
  %79 = vrot.lane.b32.xlu0 %v71, 17
  %v80 = vpop.permute.xlu0 %79
  %vm81 = vcmask 138240
  %v82 = vsel %vm81, %v76, %v78
  %v83 = vsel %vm81, %v78, %v80
  %86 = vst [vmem:[#allocation3] sm:$0x7] %v82
  %87 = vst [vmem:[#allocation3 + $0x8] sm:$0x7] %v83
  %v90 = vcombine.high %v58, %v58
  %v91 = vrot.slane %v58, 5
  %v92 = vrot.slane %v90, 5
  %v93 = vrot.slane %v59, 5
  %94 = vrot.lane.b32.xlu0 %v91, 16
  %v95 = vpop.permute.xlu0 %94
  %96 = vrot.lane.b32.xlu0 %v92, 16
  %v97 = vpop.permute.xlu0 %96
  %98 = vrot.lane.b32.xlu0 %v93, 16
  %v99 = vpop.permute.xlu0 %98
  %vm100 = vcmask 130048
  %v101 = vsel %vm100, %v95, %v97
  %v102 = vsel %vm100, %v97, %v99
  %105 = vst [vmem:[#allocation3] sm:$0x38] %v101
  %106 = vst [vmem:[#allocation3 + $0x8] sm:$0x38] %v102
  %v109 = vcombine.low %v54, %v55
  %110 = vrot.lane.b32.xlu0 %v109, 113
  %v111 = vpop.permute.xlu0 %110
  %v112 = vrot.slane %v111, 4
  %vm113 = vcmask 924672
  %v114 = vsel %vm113, %v112, %v111
  %v117 = vmul.f32 %v58, %v114
  %v118 = vmul.f32 %v59, %v112
  %v121 = vcombine.high %v117, %v117
  %v122 = vrot.slane %v117, 2
  %v123 = vrot.slane %v121, 2
  %v124 = vrot.slane %v118, 2
  %125 = vrot.lane.b32.xlu0 %v122, 15
  %v126 = vpop.permute.xlu0 %125
  %127 = vrot.lane.b32.xlu0 %v123, 15
  %v128 = vpop.permute.xlu0 %127
  %129 = vrot.lane.b32.xlu0 %v124, 15
  %v130 = vpop.permute.xlu0 %129
  %vm131 = vcmask 121856
  %v132 = vsel %vm131, %v126, %v128
  %v133 = vsel %vm131, %v128, %v130
  %136 = vst [vmem:[#allocation3] sm:$0xc0] %v132
  %137 = vst [vmem:[#allocation3 + $0x8] sm:$0xc0] %v133
  %138 = vst [vmem:[#allocation3 + $0x20] sm:$0x1] %v132
  %139 = vst [vmem:[#allocation3 + $0x28] sm:$0x1] %v133
  %140 = vrot.lane.b32.xlu0 %v62, 127
  %v141 = vpop.permute.xlu0 %140
  %v142 = vrot.slane %v141, 4
  %vm143 = vcmask 1039360
  %v144 = vsel %vm143, %v142, %v141
  %v147 = vmul.f32 %v58, %v144
  %v148 = vmul.f32 %v59, %v142
  %v151 = vcombine.high %v147, %v147
  %v152 = vrot.slane %v147, 7
  %v153 = vrot.slane %v151, 7
  %v154 = vrot.slane %v148, 7
  %155 = vrot.lane.b32.xlu0 %v152, 1
  %v156 = vpop.permute.xlu0 %155
  %157 = vrot.lane.b32.xlu0 %v153, 1
  %v158 = vpop.permute.xlu0 %157
  %159 = vrot.lane.b32.xlu0 %v154, 1
  %v160 = vpop.permute.xlu0 %159
  %vm161 = vcmask 7168
  %v162 = vsel %vm161, %v156, %v158
  %v163 = vsel %vm161, %v158, %v160
  %166 = vst [vmem:[#allocation3 + $0x20] sm:$0xe] %v162
  %167 = vst [vmem:[#allocation3 + $0x28] sm:$0xe] %v163
  %v168 = vcombine.low %v59, %v59
  %170 = vst [vmem:[#allocation3 + $0x20] sm:$0x70] %v58
  %171 = vst [vmem:[#allocation3 + $0x28] sm:$0x70] %v168
  %172 = vrot.lane.b32.xlu0 %v58, 127
  %v173 = vpop.permute.xlu0 %172
  %174 = vrot.lane.b32.xlu0 %v59, 127
  %v175 = vpop.permute.xlu0 %174
  %v176 = vrot.slane %v173, 4
  %v177 = vrot.slane %v175, 4
  %vm178 = vcmask 1043456
  %v179 = vsel %vm178, %v176, %v177
  %v180 = vsel %vm143, %v179, %v175
  %v183 = vmul.f32 %v180, %v109
  %v185 = vcombine.high %v183, %v183
  %v186 = vrot.slane %v183, 1
  %v187 = vrot.slane %v185, 1
  %190 = vst [vmem:[#allocation3 + $0x20] sm:$0x80] %v186
  %191 = vst [vmem:[#allocation3 + $0x28] sm:$0x80] %v187
  %192 = vst [vmem:[#allocation3 + $0x40] sm:$0x3] %v186
  %193 = vst [vmem:[#allocation3 + $0x48] sm:$0x3] %v187
  %194 = vrot.lane.b32.xlu0 %v58, 113
  %v195 = vpop.permute.xlu0 %194
  %196 = vrot.lane.b32.xlu0 %v59, 113
  %v197 = vpop.permute.xlu0 %196
  %v198 = vrot.slane %v195, 4
  %v199 = vrot.slane %v197, 4
  %v200 = vsel %vm178, %v198, %v199
  %v201 = vsel %vm113, %v200, %v197
  %v204 = vmul.f32 %v201, %v62
  %v206 = vcombine.high %v204, %v204
  %v207 = vrot.slane %v204, 6
  %v208 = vrot.slane %v206, 6
  %211 = vst [vmem:[#allocation3 + $0x40] sm:$0x1c] %v207
  %212 = vst [vmem:[#allocation3 + $0x48] sm:$0x1c] %v208
  %v213 = vcombine.high %v59, %v59
  %v214 = vrot.slane %v90, 3
  %v215 = vrot.slane %v59, 3
  %v216 = vrot.slane %v213, 3
  %217 = vrot.lane.b32.xlu0 %v214, 112
  %v218 = vpop.permute.xlu0 %217
  %219 = vrot.lane.b32.xlu0 %v215, 112
  %v220 = vpop.permute.xlu0 %219
  %221 = vrot.lane.b32.xlu0 %v216, 112
  %v222 = vpop.permute.xlu0 %221
  %vm223 = vcmask 916480
  %v224 = vsel %vm223, %v218, %v220
  %v225 = vsel %vm223, %v220, %v222
  %228 = vst [vmem:[#allocation3 + $0x40] sm:$0xe0] %v224
  %229 = vst [vmem:[#allocation3 + $0x48] sm:$0xe0] %v225
  %230 = vrot.lane.b32.xlu0 %v58, 111
  %v231 = vpop.permute.xlu0 %230
  %232 = vrot.lane.b32.xlu0 %v59, 111
  %v233 = vpop.permute.xlu0 %232
  %v234 = vrot.slane %v231, 4
  %v235 = vrot.slane %v233, 4
  %v236 = vsel %vm178, %v234, %v235
  %v237 = vsel %vm66, %v236, %v233
  %v239 = vmul.f32 %v237, %v109
  %v241 = vcombine.high %v239, %v239
  %243 = vst [vmem:[#allocation3 + $0x60] sm:$0x7] %v239
  %244 = vst [vmem:[#allocation3 + $0x68] sm:$0x7] %v241
  %s245 = scalar_lea.vmem %s0, 8
  %v246 = vld [vmem:[%s245] sm:$0x77]
  %247 = vst [vmem:[#allocation2 + $0x4] sm:$0x77] %v246
  %v248 = vld [vmem:[#allocation2] sm:$0x77]
  %v249 = vld [vmem:[#allocation2 + $0x8] sm:$0x77]
  %v250 = vmul.f32 %v248, %v67
  %v251 = vmul.f32 %v249, %v65
  %v254 = vcombine.high %v250, %v250
  %255 = vrot.lane.b32.xlu0 %v250, 17
  %v256 = vpop.permute.xlu0 %255
  %257 = vrot.lane.b32.xlu0 %v254, 17
  %v258 = vpop.permute.xlu0 %257
  %259 = vrot.lane.b32.xlu0 %v251, 17
  %v260 = vpop.permute.xlu0 %259
  %v261 = vsel %vm81, %v256, %v258
  %v262 = vsel %vm81, %v258, %v260
  %265 = vst [vmem:[#allocation3 + $0x10] sm:$0x7] %v261
  %266 = vst [vmem:[#allocation3 + $0x18] sm:$0x7] %v262
  %v269 = vcombine.high %v248, %v248
  %v270 = vrot.slane %v248, 5
  %v271 = vrot.slane %v269, 5
  %v272 = vrot.slane %v249, 5
  %273 = vrot.lane.b32.xlu0 %v270, 16
  %v274 = vpop.permute.xlu0 %273
  %275 = vrot.lane.b32.xlu0 %v271, 16
  %v276 = vpop.permute.xlu0 %275
  %277 = vrot.lane.b32.xlu0 %v272, 16
  %v278 = vpop.permute.xlu0 %277
  %v279 = vsel %vm100, %v274, %v276
  %v280 = vsel %vm100, %v276, %v278
  %283 = vst [vmem:[#allocation3 + $0x10] sm:$0x38] %v279
  %284 = vst [vmem:[#allocation3 + $0x18] sm:$0x38] %v280
  %v285 = vmul.f32 %v248, %v114
  %v286 = vmul.f32 %v249, %v112
  %v289 = vcombine.high %v285, %v285
  %v290 = vrot.slane %v285, 2
  %v291 = vrot.slane %v289, 2
  %v292 = vrot.slane %v286, 2
  %293 = vrot.lane.b32.xlu0 %v290, 15
  %v294 = vpop.permute.xlu0 %293
  %295 = vrot.lane.b32.xlu0 %v291, 15
  %v296 = vpop.permute.xlu0 %295
  %297 = vrot.lane.b32.xlu0 %v292, 15
  %v298 = vpop.permute.xlu0 %297
  %v299 = vsel %vm131, %v294, %v296
  %v300 = vsel %vm131, %v296, %v298
  %303 = vst [vmem:[#allocation3 + $0x10] sm:$0xc0] %v299
  %304 = vst [vmem:[#allocation3 + $0x18] sm:$0xc0] %v300
  %305 = vst [vmem:[#allocation3 + $0x30] sm:$0x1] %v299
  %306 = vst [vmem:[#allocation3 + $0x38] sm:$0x1] %v300
  %v307 = vmul.f32 %v248, %v144
  %v308 = vmul.f32 %v249, %v142
  %v311 = vcombine.high %v307, %v307
  %v312 = vrot.slane %v307, 7
  %v313 = vrot.slane %v311, 7
  %v314 = vrot.slane %v308, 7
  %315 = vrot.lane.b32.xlu0 %v312, 1
  %v316 = vpop.permute.xlu0 %315
  %317 = vrot.lane.b32.xlu0 %v313, 1
  %v318 = vpop.permute.xlu0 %317
  %319 = vrot.lane.b32.xlu0 %v314, 1
  %v320 = vpop.permute.xlu0 %319
  %v321 = vsel %vm161, %v316, %v318
  %v322 = vsel %vm161, %v318, %v320
  %325 = vst [vmem:[#allocation3 + $0x30] sm:$0xe] %v321
  %326 = vst [vmem:[#allocation3 + $0x38] sm:$0xe] %v322
  %v327 = vcombine.low %v249, %v249
  %329 = vst [vmem:[#allocation3 + $0x30] sm:$0x70] %v248
  %330 = vst [vmem:[#allocation3 + $0x38] sm:$0x70] %v327
  %331 = vrot.lane.b32.xlu0 %v248, 127
  %v332 = vpop.permute.xlu0 %331
  %333 = vrot.lane.b32.xlu0 %v249, 127
  %v334 = vpop.permute.xlu0 %333
  %v335 = vrot.slane %v332, 4
  %v336 = vrot.slane %v334, 4
  %v337 = vsel %vm178, %v335, %v336
  %v338 = vsel %vm143, %v337, %v334
  %v340 = vmul.f32 %v338, %v109
  %v342 = vcombine.high %v340, %v340
  %v343 = vrot.slane %v340, 1
  %v344 = vrot.slane %v342, 1
  %347 = vst [vmem:[#allocation3 + $0x30] sm:$0x80] %v343
  %348 = vst [vmem:[#allocation3 + $0x38] sm:$0x80] %v344
  %349 = vst [vmem:[#allocation3 + $0x50] sm:$0x3] %v343
  %350 = vst [vmem:[#allocation3 + $0x58] sm:$0x3] %v344
  %351 = vrot.lane.b32.xlu0 %v248, 113
  %v352 = vpop.permute.xlu0 %351
  %353 = vrot.lane.b32.xlu0 %v249, 113
  %v354 = vpop.permute.xlu0 %353
  %v355 = vrot.slane %v352, 4
  %v356 = vrot.slane %v354, 4
  %v357 = vsel %vm178, %v355, %v356
  %v358 = vsel %vm113, %v357, %v354
  %v360 = vmul.f32 %v358, %v62
  %v362 = vcombine.high %v360, %v360
  %v363 = vrot.slane %v360, 6
  %v364 = vrot.slane %v362, 6
  %367 = vst [vmem:[#allocation3 + $0x50] sm:$0x1c] %v363
  %368 = vst [vmem:[#allocation3 + $0x58] sm:$0x1c] %v364
  %v369 = vcombine.high %v249, %v249
  %v370 = vrot.slane %v269, 3
  %v371 = vrot.slane %v249, 3
  %v372 = vrot.slane %v369, 3
  %373 = vrot.lane.b32.xlu0 %v370, 112
  %v374 = vpop.permute.xlu0 %373
  %375 = vrot.lane.b32.xlu0 %v371, 112
  %v376 = vpop.permute.xlu0 %375
  %377 = vrot.lane.b32.xlu0 %v372, 112
  %v378 = vpop.permute.xlu0 %377
  %v379 = vsel %vm223, %v374, %v376
  %v380 = vsel %vm223, %v376, %v378
  %383 = vst [vmem:[#allocation3 + $0x50] sm:$0xe0] %v379
  %384 = vst [vmem:[#allocation3 + $0x58] sm:$0xe0] %v380
  %385 = vrot.lane.b32.xlu0 %v248, 111
  %v386 = vpop.permute.xlu0 %385
  %387 = vrot.lane.b32.xlu0 %v249, 111
  %v388 = vpop.permute.xlu0 %387
  %v389 = vrot.slane %v386, 4
  %v390 = vrot.slane %v388, 4
  %v391 = vsel %vm178, %v389, %v390
  %v392 = vsel %vm66, %v391, %v388
  %v394 = vmul.f32 %v392, %v109
  %v396 = vcombine.high %v394, %v394
  %398 = vst [vmem:[#allocation3 + $0x70] sm:$0x7] %v394
  %399 = vst [vmem:[#allocation3 + $0x78] sm:$0x7] %v396
  %v400 = vld [vmem:[%s1] sm:$0xff]
  %v401 = vld [vmem:[%s1 + $0x8] sm:$0xff]
  %v402 = vld [vmem:[%s1 + $0x10] sm:$0xff]
  %v403 = vld [vmem:[%s1 + $0x18] sm:$0xff]
  %v404 = vld [vmem:[%s1 + $0x20] sm:$0xff]
  %v405 = vld [vmem:[%s1 + $0x28] sm:$0xff]
  %v406 = vld [vmem:[#allocation3] sm:$0xff]
  %v407 = vld [vmem:[#allocation3 + $0x8] sm:$0xff]
  %v408 = vld [vmem:[#allocation3 + $0x10] sm:$0xff]
  %v409 = vld [vmem:[#allocation3 + $0x18] sm:$0xff]
  %v410 = vld [vmem:[#allocation3 + $0x20] sm:$0xff]
  %v411 = vld [vmem:[#allocation3 + $0x28] sm:$0xff]
  %v412 = vld [vmem:[#allocation3 + $0x30] sm:$0xff]
  %v413 = vld [vmem:[#allocation3 + $0x38] sm:$0xff]
  %v414 = vld [vmem:[#allocation3 + $0x40] sm:$0xff]
  %v415 = vld [vmem:[#allocation3 + $0x48] sm:$0xff]
  %v416 = vld [vmem:[#allocation3 + $0x50] sm:$0xff]
  %v417 = vld [vmem:[#allocation3 + $0x58] sm:$0xff]
  %v418 = vld [vmem:[#allocation3 + $0x60] sm:$0xff]
  %v419 = vld [vmem:[#allocation3 + $0x68] sm:$0xff]
  %v420 = vld [vmem:[#allocation3 + $0x70] sm:$0xff]
  %v421 = vld [vmem:[#allocation3 + $0x78] sm:$0xff]
  %vm422 = vcmask 261120
  %v424 = vsel %vm422, %v400, 0
  %v427 = vsel %vm422, %v401, 0
  %v430 = vsel %vm422, %v402, 0
  %v433 = vsel %vm422, %v403, 0
  %v436 = vsel %vm422, %v404, 0
  %v439 = vsel %vm422, %v405, 0
  %441 = vmatprep.subr.mxu0 %v407
  %442 = vmatpush1.msra.mxu0 %v406
  %443 = vmatprep.subr.mxu0 %v411
  %444 = vmatpush1.msra.mxu0 %v410
  %445 = vmatprep.subr.mxu0 %v415
  %446 = vmatpush1.msra.mxu0 %v414
  %447 = vmatprep.subr.mxu0 %v419
  %448 = vmatpush1.msra.mxu0 %v418
  %449 = vmatprep.subr.mxu0 0.0
  %450 = vmatpush1.msra.mxu0 0.0
  %451 = vmatprep.subr.mxu0 0.0
  %452 = vmatpush1.msra.mxu0 0.0
  %453 = vmatprep.subr.mxu0 0.0
  %454 = vmatpush1.msra.mxu0 0.0
  %455 = vmatprep.subr.mxu0 0.0
  %456 = vmatpush1.msra.mxu0 0.0
  %457 = vmatprep.subr.mxu0 0.0
  %458 = vmatpush1.msra.mxu0 0.0
  %459 = vmatprep.subr.mxu0 0.0
  %460 = vmatpush1.msra.mxu0 0.0
  %461 = vmatprep.subr.mxu0 0.0
  %462 = vmatpush1.msra.mxu0 0.0
  %463 = vmatprep.subr.mxu0 0.0
  %464 = vmatpush1.msra.mxu0 0.0
  %465 = vmatprep.subr.mxu0 0.0
  %466 = vmatpush1.msra.mxu0 0.0
  %467 = vmatprep.subr.mxu0 0.0
  %468 = vmatpush1.msra.mxu0 0.0
  %469 = vmatprep.subr.mxu0 0.0
  %470 = vmatpush1.msra.mxu0 0.0
  %471 = vmatprep.subr.mxu0 0.0
  %472 = vmatpush1.msra.mxu0 0.0
  %473 = vmatprep.subr.mxu0 0.0
  %474 = vmatpush1.msra.mxu0 0.0
  %475 = vmatprep.subr.mxu0 0.0
  %476 = vmatpush1.msra.mxu0 0.0
  %477 = vmatprep.subr.mxu0 0.0
  %478 = vmatpush1.msra.mxu0 0.0
  %479 = vmatprep.subr.mxu0 0.0
  %480 = vmatpush1.msra.mxu0 0.0
  %481 = vmatprep.subr.mxu0 0.0
  %482 = vmatpush1.msra.mxu0 0.0
  %483 = vmatprep.subr.mxu0 0.0
  %484 = vmatpush1.msra.mxu0 0.0
  %485 = vmatprep.subr.mxu0 0.0
  %486 = vmatpush1.msra.mxu0 0.0
  %487 = vmatprep.subr.mxu0 0.0
  %488 = vmatpush1.msra.mxu0 0.0
  %489 = vmatprep.subr.mxu0 0.0
  %490 = vmatpush1.msra.mxu0 0.0
  %491 = vmatprep.subr.mxu0 0.0
  %492 = vmatpush1.msra.mxu0 0.0
  %493 = vmatprep.subr.mxu0 0.0
  %494 = vmatpush1.msra.mxu0 0.0
  %495 = vmatprep.subr.mxu0 0.0
  %496 = vmatpush1.msra.mxu0 0.0
  %497 = vmatprep.subr.mxu0 0.0
  %498 = vmatpush1.msra.mxu0 0.0
  %499 = vmatprep.subr.mxu0 0.0
  %500 = vmatpush1.msra.mxu0 0.0
  %501 = vmatprep.subr.mxu0 0.0
  %502 = vmatpush1.msra.mxu0 0.0
  %503 = vmatprep.subr.mxu0 0.0
  %504 = vmatpush1.msra.mxu0 0.0
  %505 = vmatprep.mubr.f32.mxu0 0.0
  %506 = vmatmul.mubr.f32.gmra.mrb[0].mxu0 %v424
  %v507 = vpop.f32.mrb[0].mxu0
  %v508 = vadd.f32 0.0, %v507
  %v509 = vpop.f32.mrb[0].mxu0
  %v510 = vadd.f32 0.0, %v509
  %511 = vmatprep.mubr.f32.mxu0 0.0
  %512 = vmatmul.mubr.f32.gmra.mrb[0].mxu0 %v427
  %v513 = vpop.f32.mrb[0].mxu0
  %v514 = vadd.f32 0.0, %v513
  %v515 = vpop.f32.mrb[0].mxu0
  %v516 = vadd.f32 0.0, %v515
  %517 = vmatprep.mubr.f32.mxu0 0.0
  %518 = vmatmul.mubr.f32.gmra.mrb[0].mxu0 %v430
  %v519 = vpop.f32.mrb[0].mxu0
  %v520 = vadd.f32 0.0, %v519
  %v521 = vpop.f32.mrb[0].mxu0
  %v522 = vadd.f32 0.0, %v521
  %523 = vmatprep.mubr.f32.mxu0 0.0
  %524 = vmatmul.mubr.f32.gmra.mrb[0].mxu0 %v433
  %v525 = vpop.f32.mrb[0].mxu0
  %v526 = vadd.f32 0.0, %v525
  %v527 = vpop.f32.mrb[0].mxu0
  %v528 = vadd.f32 0.0, %v527
  %529 = vmatprep.mubr.f32.mxu0 0.0
  %530 = vmatmul.mubr.f32.gmra.mrb[0].mxu0 %v436
  %v531 = vpop.f32.mrb[0].mxu0
  %v532 = vadd.f32 0.0, %v531
  %v533 = vpop.f32.mrb[0].mxu0
  %v534 = vadd.f32 0.0, %v533
  %535 = vmatprep.mubr.f32.mxu0 0.0
  %536 = vmatmul.mubr.f32.gmra.mrb[0].mxu0 %v439
  %v537 = vpop.f32.mrb[0].mxu0
  %v538 = vadd.f32 0.0, %v537
  %v539 = vpop.f32.mrb[0].mxu0
  %v540 = vadd.f32 0.0, %v539
  %541 = vdwg.mxu0
  %542 = vmatprep.subr.mxu0 %v409
  %543 = vmatpush1.msra.mxu0 %v408
  %544 = vmatprep.subr.mxu0 %v413
  %545 = vmatpush1.msra.mxu0 %v412
  %546 = vmatprep.subr.mxu0 %v417
  %547 = vmatpush1.msra.mxu0 %v416
  %548 = vmatprep.subr.mxu0 %v421
  %549 = vmatpush1.msra.mxu0 %v420
  %550 = vmatprep.subr.mxu0 0.0
  %551 = vmatpush1.msra.mxu0 0.0
  %552 = vmatprep.subr.mxu0 0.0
  %553 = vmatpush1.msra.mxu0 0.0
  %554 = vmatprep.subr.mxu0 0.0
  %555 = vmatpush1.msra.mxu0 0.0
  %556 = vmatprep.subr.mxu0 0.0
  %557 = vmatpush1.msra.mxu0 0.0
  %558 = vmatprep.subr.mxu0 0.0
  %559 = vmatpush1.msra.mxu0 0.0
  %560 = vmatprep.subr.mxu0 0.0
  %561 = vmatpush1.msra.mxu0 0.0
  %562 = vmatprep.subr.mxu0 0.0
  %563 = vmatpush1.msra.mxu0 0.0
  %564 = vmatprep.subr.mxu0 0.0
  %565 = vmatpush1.msra.mxu0 0.0
  %566 = vmatprep.subr.mxu0 0.0
  %567 = vmatpush1.msra.mxu0 0.0
  %568 = vmatprep.subr.mxu0 0.0
  %569 = vmatpush1.msra.mxu0 0.0
  %570 = vmatprep.subr.mxu0 0.0
  %571 = vmatpush1.msra.mxu0 0.0
  %572 = vmatprep.subr.mxu0 0.0
  %573 = vmatpush1.msra.mxu0 0.0
  %574 = vmatprep.subr.mxu0 0.0
  %575 = vmatpush1.msra.mxu0 0.0
  %576 = vmatprep.subr.mxu0 0.0
  %577 = vmatpush1.msra.mxu0 0.0
  %578 = vmatprep.subr.mxu0 0.0
  %579 = vmatpush1.msra.mxu0 0.0
  %580 = vmatprep.subr.mxu0 0.0
  %581 = vmatpush1.msra.mxu0 0.0
  %582 = vmatprep.subr.mxu0 0.0
  %583 = vmatpush1.msra.mxu0 0.0
  %584 = vmatprep.subr.mxu0 0.0
  %585 = vmatpush1.msra.mxu0 0.0
  %586 = vmatprep.subr.mxu0 0.0
  %587 = vmatpush1.msra.mxu0 0.0
  %588 = vmatprep.subr.mxu0 0.0
  %589 = vmatpush1.msra.mxu0 0.0
  %590 = vmatprep.subr.mxu0 0.0
  %591 = vmatpush1.msra.mxu0 0.0
  %592 = vmatprep.subr.mxu0 0.0
  %593 = vmatpush1.msra.mxu0 0.0
  %594 = vmatprep.subr.mxu0 0.0
  %595 = vmatpush1.msra.mxu0 0.0
  %596 = vmatprep.subr.mxu0 0.0
  %597 = vmatpush1.msra.mxu0 0.0
  %598 = vmatprep.subr.mxu0 0.0
  %599 = vmatpush1.msra.mxu0 0.0
  %600 = vmatprep.subr.mxu0 0.0
  %601 = vmatpush1.msra.mxu0 0.0
  %602 = vmatprep.subr.mxu0 0.0
  %603 = vmatpush1.msra.mxu0 0.0
  %604 = vmatprep.subr.mxu0 0.0
  %605 = vmatpush1.msra.mxu0 0.0
  %606 = vmatprep.mubr.f32.mxu0 0.0
  %607 = vmatmul.mubr.f32.gmra.mrb[0].mxu0 %v424
  %v608 = vpop.f32.mrb[0].mxu0
  %v609 = vadd.f32 0.0, %v608
  %v610 = vpop.f32.mrb[0].mxu0
  %v611 = vadd.f32 0.0, %v610
  %612 = vmatprep.mubr.f32.mxu0 0.0
  %613 = vmatmul.mubr.f32.gmra.mrb[0].mxu0 %v427
  %v614 = vpop.f32.mrb[0].mxu0
  %v615 = vadd.f32 0.0, %v614
  %v616 = vpop.f32.mrb[0].mxu0
  %v617 = vadd.f32 0.0, %v616
  %618 = vmatprep.mubr.f32.mxu0 0.0
  %619 = vmatmul.mubr.f32.gmra.mrb[0].mxu0 %v430
  %v620 = vpop.f32.mrb[0].mxu0
  %v621 = vadd.f32 0.0, %v620
  %v622 = vpop.f32.mrb[0].mxu0
  %v623 = vadd.f32 0.0, %v622
  %624 = vmatprep.mubr.f32.mxu0 0.0
  %625 = vmatmul.mubr.f32.gmra.mrb[0].mxu0 %v433
  %v626 = vpop.f32.mrb[0].mxu0
  %v627 = vadd.f32 0.0, %v626
  %v628 = vpop.f32.mrb[0].mxu0
  %v629 = vadd.f32 0.0, %v628
  %630 = vmatprep.mubr.f32.mxu0 0.0
  %631 = vmatmul.mubr.f32.gmra.mrb[0].mxu0 %v436
  %v632 = vpop.f32.mrb[0].mxu0
  %v633 = vadd.f32 0.0, %v632
  %v634 = vpop.f32.mrb[0].mxu0
  %v635 = vadd.f32 0.0, %v634
  %636 = vmatprep.mubr.f32.mxu0 0.0
  %637 = vmatmul.mubr.f32.gmra.mrb[0].mxu0 %v439
  %v638 = vpop.f32.mrb[0].mxu0
  %v639 = vadd.f32 0.0, %v638
  %v640 = vpop.f32.mrb[0].mxu0
  %v641 = vadd.f32 0.0, %v640
  %642 = vdwg.mxu0
  %643 = vst [vmem:[%s2] sm:$0xff] %v508
  %644 = vst [vmem:[%s2 + $0x8] sm:$0xff] %v510
  %645 = vst [vmem:[%s2 + $0x10] sm:$0xff] %v514
  %646 = vst [vmem:[%s2 + $0x18] sm:$0xff] %v516
  %647 = vst [vmem:[%s2 + $0x20] sm:$0xff] %v520
  %648 = vst [vmem:[%s2 + $0x28] sm:$0xff] %v522
  %649 = vst [vmem:[%s2 + $0x30] sm:$0xff] %v526
  %650 = vst [vmem:[%s2 + $0x38] sm:$0xff] %v528
  %651 = vst [vmem:[%s2 + $0x40] sm:$0xff] %v532
  %652 = vst [vmem:[%s2 + $0x48] sm:$0xff] %v534
  %653 = vst [vmem:[%s2 + $0x50] sm:$0xff] %v538
  %654 = vst [vmem:[%s2 + $0x58] sm:$0xff] %v540
  %s655 = scalar_lea.vmem %s2, 96
  %656 = vst [vmem:[%s655] sm:$0xff] %v609
  %657 = vst [vmem:[%s655 + $0x8] sm:$0xff] %v611
  %658 = vst [vmem:[%s655 + $0x10] sm:$0xff] %v615
  %659 = vst [vmem:[%s655 + $0x18] sm:$0xff] %v617
  %660 = vst [vmem:[%s655 + $0x20] sm:$0xff] %v621
  %661 = vst [vmem:[%s655 + $0x28] sm:$0xff] %v623
  %662 = vst [vmem:[%s655 + $0x30] sm:$0xff] %v627
  %663 = vst [vmem:[%s655 + $0x38] sm:$0xff] %v629
  %664 = vst [vmem:[%s655 + $0x40] sm:$0xff] %v633
  %665 = vst [vmem:[%s655 + $0x48] sm:$0xff] %v635
  %666 = vst [vmem:[%s655 + $0x50] sm:$0xff] %v639
  %667 = vst [vmem:[%s655 + $0x58] sm:$0xff] %v641
  // Predicated region
  $region10: #{overlap_patch_embed.1} parent=0 // pred_check
    _
  $region11: #{overlap_patch_embed.1} parent=0 // pred_check_branch
    %669 = sbr.rel (0) target = $region13
  $region12: #{overlap_patch_embed.1} parent=0 // pred_region
    _
  $region13: #{overlap_patch_embed.1} parent=0 // pred_fallthru
    _
  // Predicated region
  $region14: #{overlap_patch_embed.1} parent=0 // pred_check
    _
  $region15: #{overlap_patch_embed.1} parent=0 // pred_check_branch
    %671 = sbr.rel (0) target = $region17
  $region16: #{overlap_patch_embed.1} parent=0 // pred_region
    _
  $region17: #{overlap_patch_embed.1} parent=0 // pred_fallthru
    _

</llo_original>
